<compile_context>
chip_gen: v5e
topology: v5e:2x2
jax: 0.10.0
libtpu: 0.0.40
codegen_flags: <defaults>
</compile_context>

<pallas_src>
import jax
import jax.numpy as jnp
from jax.experimental import pallas as pl
from jax.experimental.pallas import tpu as pltpu


def _decoder_mlp_kernel(xt_ref, w1t_ref, b1_ref, w2t_ref, b2_ref, ot_ref):
    # xt_ref : (node_dim, TN)   feature-major tile (nodes on the lane axis)
    # w1t_ref: (node_dim, node_dim)  == W1.T
    # b1_ref : (node_dim, 1)         f32
    # w2t_ref: (out_dim, node_dim)   == W2.T
    # b2_ref : (out_dim, 1)          f32
    # ot_ref : (out_dim, TN)
    x = xt_ref[...]
    # h = W1.T @ x + b1, accumulated in f32 on the MXU.
    h = jnp.dot(w1t_ref[...], x, preferred_element_type=jnp.float32) + b1_ref[...]
    # SiLU in f32 (VPU mul + EUP sigmoid; keeps v5e on its native f32 path).
    h = h * jax.nn.sigmoid(h)
    # Downcast only at the second MXU input (no-op when compute dtype is f32).
    y = jnp.dot(w2t_ref[...], h.astype(w2t_ref.dtype),
                preferred_element_type=jnp.float32) + b2_ref[...]
    ot_ref[...] = y.astype(ot_ref.dtype)


def decoder_forward(h_node, w1, b1, w2, b2, *, tile_n=2048, compute_dtype=None):
    """Pallas implementation of Decoder.forward(data) == MLP(data.h_node).

    h_node: [N, node_dim]; w1: [node_dim, node_dim]; b1: [node_dim];
    w2: [node_dim, out_dim]; b2: [out_dim].  Returns [N, out_dim].
    """
    n, node_dim = h_node.shape
    out_dim = w2.shape[1]
    out_dtype = h_node.dtype

    if compute_dtype is not None:
        h_node = h_node.astype(compute_dtype)
        w1 = w1.astype(compute_dtype)
        w2 = w2.astype(compute_dtype)

    # Feature-major orientation so the node axis is lane-dense for loads,
    # the elementwise SiLU, and the narrow (out_dim=8) output stores.
    xt = h_node.T                                    # (node_dim, N)
    w1t = w1.T                                       # (node_dim, node_dim)
    w2t = w2.T                                       # (out_dim, node_dim)
    b1c = b1.reshape(node_dim, 1).astype(jnp.float32)
    b2c = b2.reshape(out_dim, 1).astype(jnp.float32)

    # Tile the node axis: pad N to a multiple of 128 lanes, pick a tile that
    # respects the tile_n budget, and keep >=2 grid steps (v7x has 2 TCs; the
    # "parallel" axis is what lets Mosaic split the grid across them).
    lane = 128
    n_units = pl.cdiv(n, lane)
    max_units = max(1, tile_n // lane)
    if n_units >= 2:
        grid_n = max(2, pl.cdiv(n_units, max_units))
        units = pl.cdiv(n_units, grid_n)
        grid_n = pl.cdiv(n_units, units)
    else:
        units, grid_n = 1, 1
    tile = units * lane
    n_pad = grid_n * tile
    if n_pad != n:
        xt = jnp.pad(xt, ((0, 0), (0, n_pad - n)))   # zero rows are harmless

    out_t = pl.pallas_call(
        _decoder_mlp_kernel,
        out_shape=jax.ShapeDtypeStruct((out_dim, n_pad), out_dtype),
        grid_spec=pltpu.PrefetchScalarGridSpec(
            num_scalar_prefetch=0,
            grid=(grid_n,),
            in_specs=[
                pl.BlockSpec((node_dim, tile), lambda i: (0, i)),       # x tile
                pl.BlockSpec((node_dim, node_dim), lambda i: (0, 0)),   # W1.T
                pl.BlockSpec((node_dim, 1), lambda i: (0, 0)),          # b1
                pl.BlockSpec((out_dim, node_dim), lambda i: (0, 0)),    # W2.T
                pl.BlockSpec((out_dim, 1), lambda i: (0, 0)),           # b2
            ],
            out_specs=pl.BlockSpec((out_dim, tile), lambda i: (0, i)),
        ),
        compiler_params=pltpu.CompilerParams(
            dimension_semantics=("parallel",)),
    )(xt, w1t, b1c, w2t, b2c)

    return out_t[:, :n].T                            # back to (N, out_dim)


def _reference(h_node, w1, b1, w2, b2):
    h = h_node @ w1 + b1
    h = h * jax.nn.sigmoid(h)
    return h @ w2 + b2


if __name__ == "__main__":
    # Small shapes consistent with the module; N deliberately NOT a multiple
    # of 128 to exercise the padded-tail path.
    num_nodes = 300
    node_dim = 32
    out_dim = 8

    key = jax.random.PRNGKey(0)
    k_x, k_w1, k_b1, k_w2, k_b2 = jax.random.split(key, 5)

    # Deterministic synthetic parameters (PyTorch-Linear-like uniform init).
    lim = 1.0 / (node_dim ** 0.5)
    h_node = jax.random.normal(k_x, (num_nodes, node_dim), dtype=jnp.float32)
    w1 = jax.random.uniform(k_w1, (node_dim, node_dim), jnp.float32, -lim, lim)
    b1 = jax.random.uniform(k_b1, (node_dim,), jnp.float32, -lim, lim)
    w2 = jax.random.uniform(k_w2, (node_dim, out_dim), jnp.float32, -lim, lim)
    b2 = jax.random.uniform(k_b2, (out_dim,), jnp.float32, -lim, lim)

    ref = _reference(h_node, w1, b1, w2, b2)

    # f32 path (exact-precision check).
    out = jax.block_until_ready(decoder_forward(h_node, w1, b1, w2, b2))
    assert out.shape == (num_nodes, out_dim)
    assert jnp.allclose(out, ref, atol=1e-4, rtol=1e-4), "f32 mismatch vs reference"

    # bf16 compute path (memory-roofline win on v6e/v7x); looser tolerance.
    out_bf16 = jax.block_until_ready(
        decoder_forward(h_node, w1, b1, w2, b2, compute_dtype=jnp.bfloat16))
    assert out_bf16.shape == (num_nodes, out_dim)
    assert jnp.allclose(out_bf16, ref, atol=5e-2, rtol=5e-2), "bf16 mismatch vs reference"

    print("KERNEL_OK")
</pallas_src>

<mosaic_0001>
module attributes {stable_mosaic.version = 11 : i64} {
  func.func @_decoder_mlp_kernel(%arg0: i32, %arg1: memref<32x256xf32, #tpu.memory_space<vmem>>, %arg2: memref<32x32xf32, #tpu.memory_space<vmem>>, %arg3: memref<32x1xf32, #tpu.memory_space<vmem>>, %arg4: memref<8x32xf32, #tpu.memory_space<vmem>>, %arg5: memref<8x1xf32, #tpu.memory_space<vmem>>, %arg6: memref<8x256xf32, #tpu.memory_space<vmem>>) attributes {dimension_semantics = [#tpu.dimension_semantics<parallel>], iteration_bounds = array<i64: 2>, scalar_prefetch = 0 : i64, scratch_operands = 0 : i64, tpu.core_type = #tpu.core_type<tc>, window_params = [{transform_indices = @transform_0, window_bounds = array<i64: 32, 256>}, {pipeline_mode = #tpu.pipeline_mode<synchronous>, transform_indices = @transform_1, window_bounds = array<i64: 32, 32>}, {pipeline_mode = #tpu.pipeline_mode<synchronous>, transform_indices = @transform_2, window_bounds = array<i64: 32, 1>}, {pipeline_mode = #tpu.pipeline_mode<synchronous>, transform_indices = @transform_3, window_bounds = array<i64: 8, 32>}, {pipeline_mode = #tpu.pipeline_mode<synchronous>, transform_indices = @transform_4, window_bounds = array<i64: 8, 1>}, {transform_indices = @transform_5, window_bounds = array<i64: 8, 256>}]} {
    %c0 = arith.constant 0 : index
    %c0_0 = arith.constant 0 : index
    %0 = vector.load %arg1[%c0, %c0_0] : memref<32x256xf32, #tpu.memory_space<vmem>>, vector<32x256xf32>
    %c0_1 = arith.constant 0 : index
    %c0_2 = arith.constant 0 : index
    %1 = vector.load %arg2[%c0_1, %c0_2] : memref<32x32xf32, #tpu.memory_space<vmem>>, vector<32x32xf32>
    %cst = arith.constant dense<0.000000e+00> : vector<32x256xf32>
    %2 = tpu.matmul %1, %0, %cst {dimension_numbers = #tpu.dot_dimension_numbers<[1], [0], [0], [1], [0, 0, 1, 1], [], []>} : vector<32x32xf32>, vector<32x256xf32>, vector<32x256xf32> -> vector<32x256xf32>
    %c0_3 = arith.constant 0 : index
    %c0_4 = arith.constant 0 : index
    %3 = vector.load %arg3[%c0_3, %c0_4] : memref<32x1xf32, #tpu.memory_space<vmem>>, vector<32x1xf32>
    %4 = vector.broadcast %3 : vector<32x1xf32> to vector<32x256xf32>
    %5 = arith.addf %2, %4 : vector<32x256xf32>
    %6 = arith.negf %5 : vector<32x256xf32>
    %7 = math.exp %6 : vector<32x256xf32>
    %cst_5 = arith.constant 1.000000e+00 : f32
    %8 = vector.broadcast %cst_5 : f32 to vector<32x256xf32>
    %9 = arith.addf %8, %7 : vector<32x256xf32>
    %10 = arith.divf %8, %9 : vector<32x256xf32>
    %11 = arith.mulf %5, %10 : vector<32x256xf32>
    %c0_6 = arith.constant 0 : index
    %c0_7 = arith.constant 0 : index
    %12 = vector.load %arg4[%c0_6, %c0_7] : memref<8x32xf32, #tpu.memory_space<vmem>>, vector<8x32xf32>
    %cst_8 = arith.constant dense<0.000000e+00> : vector<8x256xf32>
    %13 = tpu.matmul %12, %11, %cst_8 {dimension_numbers = #tpu.dot_dimension_numbers<[1], [0], [0], [1], [0, 0, 1, 1], [], []>} : vector<8x32xf32>, vector<32x256xf32>, vector<8x256xf32> -> vector<8x256xf32>
    %c0_9 = arith.constant 0 : index
    %c0_10 = arith.constant 0 : index
    %14 = vector.load %arg5[%c0_9, %c0_10] : memref<8x1xf32, #tpu.memory_space<vmem>>, vector<8x1xf32>
    %15 = vector.broadcast %14 : vector<8x1xf32> to vector<8x256xf32>
    %16 = arith.addf %13, %15 : vector<8x256xf32>
    %c0_11 = arith.constant 0 : index
    %c0_12 = arith.constant 0 : index
    %17 = vector.load %arg6[%c0_11, %c0_12] : memref<8x256xf32, #tpu.memory_space<vmem>>, vector<8x256xf32>
    tpu.vector_store %arg6[%c0_11, %c0_12], %16 {strides = array<i32>} : memref<8x256xf32, #tpu.memory_space<vmem>>, vector<8x256xf32>,
    return
  }
  func.func @transform_0(%arg0: i32) -> (i32, i32) {
    %c0_i32 = arith.constant 0 : i32
    %c0_i32_0 = arith.constant 0 : i32
    return %c0_i32, %arg0 : i32, i32
  }
  func.func @transform_1(%arg0: i32) -> (i32, i32) {
    %c0_i32 = arith.constant 0 : i32
    %c0_i32_0 = arith.constant 0 : i32
    %c0_i32_1 = arith.constant 0 : i32
    return %c0_i32, %c0_i32_0 : i32, i32
  }
  func.func @transform_2(%arg0: i32) -> (i32, i32) {
    %c0_i32 = arith.constant 0 : i32
    %c0_i32_0 = arith.constant 0 : i32
    %c0_i32_1 = arith.constant 0 : i32
    return %c0_i32, %c0_i32_0 : i32, i32
  }
  func.func @transform_3(%arg0: i32) -> (i32, i32) {
    %c0_i32 = arith.constant 0 : i32
    %c0_i32_0 = arith.constant 0 : i32
    %c0_i32_1 = arith.constant 0 : i32
    return %c0_i32, %c0_i32_0 : i32, i32
  }
  func.func @transform_4(%arg0: i32) -> (i32, i32) {
    %c0_i32 = arith.constant 0 : i32
    %c0_i32_0 = arith.constant 0 : i32
    %c0_i32_1 = arith.constant 0 : i32
    return %c0_i32, %c0_i32_0 : i32, i32
  }
  func.func @transform_5(%arg0: i32) -> (i32, i32) {
    %c0_i32 = arith.constant 0 : i32
    %c0_i32_0 = arith.constant 0 : i32
    return %c0_i32, %arg0 : i32, i32
  }
}

</mosaic_0001>

<llo_original>
// kernel: tpu_custom_call.1
$region0: #{tpu_custom_call.1}
  #allocation0 [shape = 'u32[]', space=smem, size = 0x4, offset = 0x4, fixed_abs, tag = 'smem constant byte address 0x4 - core index']
  #allocation1 [shape = 'u32[72,128]{1,0:T(1,128)}', space=vmem, size = 0x9000, scoped, tag = 'internal scratch']
  %s0 = inlined_call_operand.hbm [shape: f32[32,512], index: 0, kind: input, shape index: {}]
  %s1 = inlined_call_operand.vmem [shape: f32[32,32], index: 1, kind: input, shape index: {}]
  %s2 = inlined_call_operand.vmem [shape: f32[32,1], index: 2, kind: input, shape index: {}]
  %s3 = inlined_call_operand.vmem [shape: f32[8,32], index: 3, kind: input, shape index: {}]
  %s4 = inlined_call_operand.vmem [shape: f32[8,1], index: 4, kind: input, shape index: {}]
  %s5 = inlined_call_operand.hbm [shape: f32[8,512], index: 5, kind: output, shape index: {}]
  %s6 = sld [smem:[#allocation0]]
  $region57: #{tpu_custom_call.1} parent=0
    _
  %s8 = ssub.s32 1, %s6
  %s9 = scalar_select 0, %s8, %s6
  $region1: #{tpu_custom_call.1} parent=0
    #allocation2 [shape = 'u8[65536]{0}', space=vmem, size = 0x10000, scoped, tag = 'input window, operand 0']
    #allocation3 [shape = 's32[2]{0}', space=sflag, size = 0x8, scoped, tag = 'scoped memory for tpu_custom_call.1']
    #allocation4 [shape = 's32[2]{0}', space=sflag, size = 0x8, scoped, tag = 'scoped memory for tpu_custom_call.1']
    #allocation5 [shape = 'u8[16384]{0}', space=vmem, size = 0x4000, scoped, tag = 'output window, operand 0']
    %10 = vsyncpa [#allocation3], 0
    %s11 = scalar_lea.sflag [#allocation3], 1
    %12 = vsyncpa %s11, 0
    %13 = vsyncpa [#allocation4], 0
    %s14 = scalar_lea.sflag [#allocation4], 1
    %15 = vsyncpa %s14, 0
    loop: start=0, step=1, limit=4
    $region2: #{tpu_custom_call.1} parent=1 // loop_pre_header
      _
    $region3: #{tpu_custom_call.1} parent=1 // loop_header
      %s17 = sphi 0, %s21
      %p18 = scmp.ge.s32.totalorder %s17, 4
      %s27 = sphi 0, %s29
      %s30 = sphi 0, %s27
      %s31 = sphi 0, %s30
      %s47 = sphi 0, %s31
      %s51 = sphi 0, %s51
      %s53 = sphi 0, %s51
      %s54 = sphi 0, %s53
      %s68 = sphi 0, %s54
      %s72 = sphi 0, %s72
      %s74 = sphi 0, %s72
      %s75 = sphi 0, %s74
      %s89 = sphi 0, %s75
      %s93 = sphi 0, %s93
      %s95 = sphi 0, %s93
      %s96 = sphi 0, %s95
      %s110 = sphi 0, %s96
      %s114 = sphi 0, %s114
      %s116 = sphi 0, %s114
      %s117 = sphi 0, %s116
      %s131 = sphi 0, %s117
      %s137 = sphi 0, %s139
      %s140 = sphi 0, %s137
      %s141 = sphi 0, %s140
      %s157 = sphi 0, %s141
    $region4: #{tpu_custom_call.1} parent=1 // loop_header_branch
      %20 = sbr.rel (%p18) target = $region8
    $region5: #{tpu_custom_call.1} parent=1 // loop_body
      %s22 = ssub.s32 %s17, 1
      %s23 = ssub.s32 %s17, 2
      %s24 = sadd.s32 %s17, 1
      %s25 = ssub.s32 %s17, %s24
      %p26 = scmp.eq.s32.totalorder %s25, 0
      %s28 = sadd.s32 %s27, 1
      %s29 = scalar_select %p26, %s27, %s28
      %p32 = pneg %p26
      %p33 = scmp.eq.s32.totalorder %s17, 1
      %p34 = por %p32, %p33
      %p35 = scmp.ne.s32.totalorder %s27, %s30
      %p36 = scmp.eq.s32.totalorder %s17, 0
      %p37 = por %p35, %p36
      %p38 = scmp.ne.s32.totalorder %s27, %s30
      %p39 = scmp.eq.s32.totalorder %s22, 1
      %p40 = por %p38, %p39
      %p41 = scmp.ne.s32.totalorder %s30, %s31
      %p42 = scmp.eq.s32.totalorder %s22, 0
      %p43 = por %p41, %p42
      %p44 = scmp.ne.s32.totalorder %s30, %s31
      %p45 = scmp.eq.s32.totalorder %s23, 1
      %p46 = por %p44, %p45
      %p48 = scmp.ne.s32.totalorder %s31, %s47
      %p49 = scmp.eq.s32.totalorder %s23, 0
      %p50 = por %p48, %p49
      %s52 = sadd.s32 %s51, 1
      %p55 = scmp.eq.s32.totalorder %s17, 1
      %p56 = scmp.ne.s32.totalorder %s51, %s53
      %p57 = scmp.eq.s32.totalorder %s17, 0
      %p58 = por %p56, %p57
      %p59 = scmp.ne.s32.totalorder %s51, %s53
      %p60 = scmp.eq.s32.totalorder %s22, 1
      %p61 = por %p59, %p60
      %p62 = scmp.ne.s32.totalorder %s53, %s54
      %p63 = scmp.eq.s32.totalorder %s22, 0
      %p64 = por %p62, %p63
      %p65 = scmp.ne.s32.totalorder %s53, %s54
      %p66 = scmp.eq.s32.totalorder %s23, 1
      %p67 = por %p65, %p66
      %p69 = scmp.ne.s32.totalorder %s54, %s68
      %p70 = scmp.eq.s32.totalorder %s23, 0
      %p71 = por %p69, %p70
      %s73 = sadd.s32 %s72, 1
      %p76 = scmp.eq.s32.totalorder %s17, 1
      %p77 = scmp.ne.s32.totalorder %s72, %s74
      %p78 = scmp.eq.s32.totalorder %s17, 0
      %p79 = por %p77, %p78
      %p80 = scmp.ne.s32.totalorder %s72, %s74
      %p81 = scmp.eq.s32.totalorder %s22, 1
      %p82 = por %p80, %p81
      %p83 = scmp.ne.s32.totalorder %s74, %s75
      %p84 = scmp.eq.s32.totalorder %s22, 0
      %p85 = por %p83, %p84
      %p86 = scmp.ne.s32.totalorder %s74, %s75
      %p87 = scmp.eq.s32.totalorder %s23, 1
      %p88 = por %p86, %p87
      %p90 = scmp.ne.s32.totalorder %s75, %s89
      %p91 = scmp.eq.s32.totalorder %s23, 0
      %p92 = por %p90, %p91
      %s94 = sadd.s32 %s93, 1
      %p97 = scmp.eq.s32.totalorder %s17, 1
      %p98 = scmp.ne.s32.totalorder %s93, %s95
      %p99 = scmp.eq.s32.totalorder %s17, 0
      %p100 = por %p98, %p99
      %p101 = scmp.ne.s32.totalorder %s93, %s95
      %p102 = scmp.eq.s32.totalorder %s22, 1
      %p103 = por %p101, %p102
      %p104 = scmp.ne.s32.totalorder %s95, %s96
      %p105 = scmp.eq.s32.totalorder %s22, 0
      %p106 = por %p104, %p105
      %p107 = scmp.ne.s32.totalorder %s95, %s96
      %p108 = scmp.eq.s32.totalorder %s23, 1
      %p109 = por %p107, %p108
      %p111 = scmp.ne.s32.totalorder %s96, %s110
      %p112 = scmp.eq.s32.totalorder %s23, 0
      %p113 = por %p111, %p112
      %s115 = sadd.s32 %s114, 1
      %p118 = scmp.eq.s32.totalorder %s17, 1
      %p119 = scmp.ne.s32.totalorder %s114, %s116
      %p120 = scmp.eq.s32.totalorder %s17, 0
      %p121 = por %p119, %p120
      %p122 = scmp.ne.s32.totalorder %s114, %s116
      %p123 = scmp.eq.s32.totalorder %s22, 1
      %p124 = por %p122, %p123
      %p125 = scmp.ne.s32.totalorder %s116, %s117
      %p126 = scmp.eq.s32.totalorder %s22, 0
      %p127 = por %p125, %p126
      %p128 = scmp.ne.s32.totalorder %s116, %s117
      %p129 = scmp.eq.s32.totalorder %s23, 1
      %p130 = por %p128, %p129
      %p132 = scmp.ne.s32.totalorder %s117, %s131
      %p133 = scmp.eq.s32.totalorder %s23, 0
      %p134 = por %p132, %p133
      %s135 = ssub.s32 %s17, %s24
      %p136 = scmp.eq.s32.totalorder %s135, 0
      %s138 = sadd.s32 %s137, 1
      %s139 = scalar_select %p136, %s137, %s138
      %p142 = pneg %p136
      %p143 = scmp.eq.s32.totalorder %s17, 1
      %p144 = por %p142, %p143
      %p145 = scmp.ne.s32.totalorder %s137, %s140
      %p146 = scmp.eq.s32.totalorder %s17, 0
      %p147 = por %p145, %p146
      %p148 = scmp.ne.s32.totalorder %s137, %s140
      %p149 = scmp.eq.s32.totalorder %s22, 1
      %p150 = por %p148, %p149
      %p151 = scmp.ne.s32.totalorder %s140, %s141
      %p152 = scmp.eq.s32.totalorder %s22, 0
      %p153 = por %p151, %p152
      %p154 = scmp.ne.s32.totalorder %s140, %s141
      %p155 = scmp.eq.s32.totalorder %s23, 1
      %p156 = por %p154, %p155
      %p158 = scmp.ne.s32.totalorder %s141, %s157
      %p159 = scmp.eq.s32.totalorder %s23, 0
      %p160 = por %p158, %p159
      %p161 = scmp.le.s32.totalorder 1, %s17
      %p162 = scmp.lt.s32.totalorder %s17, 3
      %p163 = pnand %p161, %p162
      %p164 = pneg %p163
      // Predicated region
      $region9: #{tpu_custom_call.1} parent=5 // pred_check
        _
      $region10: #{tpu_custom_call.1} parent=5 // pred_check_branch
        %166 = sbr.rel (%p163) target = $region12
      $region11: #{tpu_custom_call.1} parent=5 // pred_region
        %s167 = ssub.s32 %s17, 1
        // Predicated region
        $region13: #{tpu_custom_call.1} parent=11 // pred_check
          %p168 = pneg %p64
        $region14: #{tpu_custom_call.1} parent=11 // pred_check_branch
          %170 = sbr.rel (%p168) target = $region16
        $region15: #{tpu_custom_call.1} parent=11 // pred_region
          _
        $region16: #{tpu_custom_call.1} parent=11 // pred_fallthru
          _
        // Predicated region
        $region17: #{tpu_custom_call.1} parent=11 // pred_check
          %p171 = pneg %p85
        $region18: #{tpu_custom_call.1} parent=11 // pred_check_branch
          %173 = sbr.rel (%p171) target = $region20
        $region19: #{tpu_custom_call.1} parent=11 // pred_region
          _
        $region20: #{tpu_custom_call.1} parent=11 // pred_fallthru
          _
        // Predicated region
        $region21: #{tpu_custom_call.1} parent=11 // pred_check
          %p174 = pneg %p106
        $region22: #{tpu_custom_call.1} parent=11 // pred_check_branch
          %176 = sbr.rel (%p174) target = $region24
        $region23: #{tpu_custom_call.1} parent=11 // pred_region
          _
        $region24: #{tpu_custom_call.1} parent=11 // pred_fallthru
          _
        // Predicated region
        $region25: #{tpu_custom_call.1} parent=11 // pred_check
          %p177 = pneg %p127
        $region26: #{tpu_custom_call.1} parent=11 // pred_check_branch
          %179 = sbr.rel (%p177) target = $region28
        $region27: #{tpu_custom_call.1} parent=11 // pred_region
          _
        $region28: #{tpu_custom_call.1} parent=11 // pred_fallthru
          _
      $region12: #{tpu_custom_call.1} parent=5 // pred_fallthru
        _
      %p180 = scmp.lt.s32.totalorder %s17, 2
      // Predicated region
      $region29: #{tpu_custom_call.1} parent=5 // pred_check
        %p181 = pneg %p180
      $region30: #{tpu_custom_call.1} parent=5 // pred_check_branch
        %183 = sbr.rel (%p181) target = $region32
      $region31: #{tpu_custom_call.1} parent=5 // pred_region
        // Predicated region
        $region33: #{tpu_custom_call.1} parent=31 // pred_check
          %p184 = pneg %p37
        $region34: #{tpu_custom_call.1} parent=31 // pred_check_branch
          %186 = sbr.rel (%p184) target = $region36
        $region35: #{tpu_custom_call.1} parent=31 // pred_region
          %s187 = sand.u32 %s27, 1
          %s188 = scalar_lea.sflag [#allocation3], %s187
          %s189 = sand.u32 %s27, 1
          %s190 = smul.addr %s189, 64
          %s191 = scalar_lea.vmem [#allocation2], %s190
          %s192 = smul.u32 2, %s17
          %194 = vsyncadd %s188, 0
          %s195 = smul.addr %s192, 8
          %s196 = scalar_lea.hbm %s0, %s195
          %s197 = sshll.u32 %s196, 4
          %s198 = int_to_ptr.hbm [resolvable:$true] %s197
          %s199 = sshll.u32 %s191, 4
          %s200 = int_to_ptr.vmem [resolvable:$true] %s199
          %205 = dma.hbm_to_vmem [thread:$0]  %s198, 1024, %s200, %s188, 512, 256, 16
        $region36: #{tpu_custom_call.1} parent=31 // pred_fallthru
          _
      $region32: #{tpu_custom_call.1} parent=5 // pred_fallthru
        _
      %p206 = scmp.le.s32.totalorder 1, %s17
      %p207 = scmp.lt.s32.totalorder %s17, 3
      %p208 = pnand %p206, %p207
      %p209 = pneg %p208
      // Predicated region
      $region37: #{tpu_custom_call.1} parent=5 // pred_check
        _
      $region38: #{tpu_custom_call.1} parent=5 // pred_check_branch
        %211 = sbr.rel (%p208) target = $region40
      $region39: #{tpu_custom_call.1} parent=5 // pred_region
        %s212 = ssub.s32 %s17, 1
        %s213 = sand.u32 %s30, 1
        %s214 = scalar_lea.sflag [#allocation3], %s213
        %s215 = sand.u32 %s30, 1
        %s216 = smul.addr %s215, 64
        %s217 = scalar_lea.vmem [#allocation2], %s216
        // Predicated region
        $region41: #{tpu_custom_call.1} parent=39 // pred_check
          %p218 = pneg %p43
        $region42: #{tpu_custom_call.1} parent=39 // pred_check_branch
          %220 = sbr.rel (%p218) target = $region44
        $region43: #{tpu_custom_call.1} parent=39 // pred_region
          %222 = dma.done %s214, 1024
        $region44: #{tpu_custom_call.1} parent=39 // pred_fallthru
          _
        %s223 = sand.u32 %s30, 1
        %s224 = scalar_lea.sflag [#allocation3], %s223
        %s225 = sand.u32 %s30, 1
        %s226 = smul.addr %s225, 64
        %s227 = scalar_lea.vmem [#allocation2], %s226
        %p228 = pneg %p43
        %p229 = pneg %p40
        %p230 = pneg %p64
        %p231 = pneg %p61
        %p232 = pneg %p85
        %p233 = pneg %p82
        %p234 = pneg %p106
        %p235 = pneg %p103
        %p236 = pneg %p127
        %p237 = pneg %p124
        %p238 = pneg %p153
        %p239 = pneg %p150
        %s240 = sand.u32 %s140, 1
        %s241 = scalar_lea.sflag [#allocation4], %s240
        %s242 = sand.u32 %s140, 1
        %s243 = smul.addr %s242, 16
        %s244 = scalar_lea.vmem [#allocation5], %s243
        %s245 = smul.u32 2, %s22
        %s246 = smul.u32 2, %s22
        %v247 = vld [vmem:[%s217] sm:$0xff]
        %v248 = vld [vmem:[%s217 + $0x8] sm:$0xff]
        %v249 = vld [vmem:[%s217 + $0x10] sm:$0xff]
        %v250 = vld [vmem:[%s217 + $0x18] sm:$0xff]
        %v251 = vld [vmem:[%s217 + $0x20] sm:$0xff]
        %v252 = vld [vmem:[%s217 + $0x28] sm:$0xff]
        %v253 = vld [vmem:[%s217 + $0x30] sm:$0xff]
        %v254 = vld [vmem:[%s217 + $0x38] sm:$0xff]
        %v255 = vld [vmem:[%s1] sm:$0xff]
        %v256 = vld [vmem:[%s1 + $0x8] sm:$0xff]
        %v257 = vld [vmem:[%s1 + $0x10] sm:$0xff]
        %v258 = vld [vmem:[%s1 + $0x18] sm:$0xff]
        %v259 = vld [vmem:[%s2] sm:$0xff]
        %v260 = vld [vmem:[%s2 + $0x8] sm:$0xff]
        %v261 = vld [vmem:[%s2 + $0x10] sm:$0xff]
        %v262 = vld [vmem:[%s2 + $0x18] sm:$0xff]
        %264 = vset.pattern.permute.xlu0 0
        %265 = vperm.xlu0 %264, %v259
        %v266 = vpop.permute.xlu0 %265
        %269 = vset.pattern.permute.xlu0 0
        %270 = vperm.xlu0 %269, %v260
        %v271 = vpop.permute.xlu0 %270
        %274 = vset.pattern.permute.xlu0 0
        %275 = vperm.xlu0 %274, %v261
        %v276 = vpop.permute.xlu0 %275
        %279 = vset.pattern.permute.xlu0 0
        %280 = vperm.xlu0 %279, %v262
        %v281 = vpop.permute.xlu0 %280
        %vm283 = vcmask 261120
        %v285 = vsel %vm283, %v255, 0
        %v288 = vsel %vm283, %v256, 0
        %v291 = vsel %vm283, %v257, 0
        %v294 = vsel %vm283, %v258, 0
        %296 = vmatpush.msra.mxu0 0.0
        %297 = vmatpush.msra.mxu0 0.0
        %298 = vmatpush.msra.mxu0 0.0
        %299 = vmatpush.msra.mxu0 0.0
        %300 = vmatpush.msra.mxu0 0.0
        %301 = vmatpush.msra.mxu0 0.0
        %302 = vmatpush.msra.mxu0 0.0
        %303 = vmatpush.msra.mxu0 0.0
        %304 = vmatpush.msra.mxu0 0.0
        %305 = vmatpush.msra.mxu0 0.0
        %306 = vmatpush.msra.mxu0 0.0
        %307 = vmatpush.msra.mxu0 0.0
        %308 = vmatpush.msra.mxu0 %v253
        %309 = vmatpush.msra.mxu0 %v251
        %310 = vmatpush.msra.mxu0 %v249
        %311 = vmatpush.msra.mxu0 %v247
        %312 = vmatmul.f32.gmra.mxu0 %v285
        %v313 = vpop.f32.mrf.mxu0
        %v314 = vadd.f32 %v266, %v313
        %315 = vmatmul.f32.gmra.mxu0 %v288
        %v316 = vpop.f32.mrf.mxu0
        %v317 = vadd.f32 %v271, %v316
        %318 = vmatmul.f32.gmra.mxu0 %v291
        %v319 = vpop.f32.mrf.mxu0
        %v320 = vadd.f32 %v276, %v319
        %321 = vmatmul.f32.gmra.mxu0 %v294
        %v322 = vpop.f32.mrf.mxu0
        %v323 = vadd.f32 %v281, %v322
        %324 = vdwg.mxu0
        %325 = vmatpush.msra.mxu0 0.0
        %326 = vmatpush.msra.mxu0 0.0
        %327 = vmatpush.msra.mxu0 0.0
        %328 = vmatpush.msra.mxu0 0.0
        %329 = vmatpush.msra.mxu0 0.0
        %330 = vmatpush.msra.mxu0 0.0
        %331 = vmatpush.msra.mxu0 0.0
        %332 = vmatpush.msra.mxu0 0.0
        %333 = vmatpush.msra.mxu0 0.0
        %334 = vmatpush.msra.mxu0 0.0
        %335 = vmatpush.msra.mxu0 0.0
        %336 = vmatpush.msra.mxu0 0.0
        %337 = vmatpush.msra.mxu0 %v254
        %338 = vmatpush.msra.mxu0 %v252
        %339 = vmatpush.msra.mxu0 %v250
        %340 = vmatpush.msra.mxu0 %v248
        %341 = vmatmul.f32.gmra.mxu0 %v285
        %v342 = vpop.f32.mrf.mxu0
        %v343 = vadd.f32 %v266, %v342
        %344 = vmatmul.f32.gmra.mxu0 %v288
        %v345 = vpop.f32.mrf.mxu0
        %v346 = vadd.f32 %v271, %v345
        %347 = vmatmul.f32.gmra.mxu0 %v291
        %v348 = vpop.f32.mrf.mxu0
        %v349 = vadd.f32 %v276, %v348
        %350 = vmatmul.f32.gmra.mxu0 %v294
        %v351 = vpop.f32.mrf.mxu0
        %v352 = vadd.f32 %v281, %v351
        %353 = vdwg.mxu0
        %v354 = vxor.u32 %v314, 2147483648
        %v355 = vxor.u32 %v343, 2147483648
        %v356 = vxor.u32 %v317, 2147483648
        %v357 = vxor.u32 %v346, 2147483648
        %v358 = vxor.u32 %v320, 2147483648
        %v359 = vxor.u32 %v349, 2147483648
        %v360 = vxor.u32 %v323, 2147483648
        %v361 = vxor.u32 %v352, 2147483648
        %v362 = vmul.f32 %v354, 1.442695
        %v363 = vpow.pop %v362
        %v364 = vmul.f32 %v355, 1.442695
        %v365 = vpow.pop %v364
        %v366 = vmul.f32 %v356, 1.442695
        %v367 = vpow.pop %v366
        %v368 = vmul.f32 %v357, 1.442695
        %v369 = vpow.pop %v368
        %v370 = vmul.f32 %v358, 1.442695
        %v371 = vpow.pop %v370
        %v372 = vmul.f32 %v359, 1.442695
        %v373 = vpow.pop %v372
        %v374 = vmul.f32 %v360, 1.442695
        %v375 = vpow.pop %v374
        %v376 = vmul.f32 %v361, 1.442695
        %v377 = vpow.pop %v376
        %v378 = vadd.f32 %v363, 1.0
        %v379 = vadd.f32 %v365, 1.0
        %v380 = vadd.f32 %v367, 1.0
        %v381 = vadd.f32 %v369, 1.0
        %v382 = vadd.f32 %v371, 1.0
        %v383 = vadd.f32 %v373, 1.0
        %v384 = vadd.f32 %v375, 1.0
        %v385 = vadd.f32 %v377, 1.0
        %v386 = vrcp.pop %v378
        %v387 = vmul.f32 %v378, %v386
        %v388 = vsub.f32 1.0, %v387
        %v389 = vmul.f32 %v386, %v388
        %v390 = vadd.f32 %v386, %v389
        %vm391 = vweird.f32 %v378
        %vm392 = vweird.f32 %v386
        %vm393 = vmor %vm391, %vm392
        %v394 = vsel %vm393, %v386, %v390
        %v395 = vand.u32 2147483647, %v378
        %vm396 = vcmp.eq.f32.partialorder %v395, 8.507059e+37
        %v397 = vand.u32 %v378, 2147483648
        %v398 = vor.u32 1.1754944e-38, %v397
        %v399 = vsel %vm396, %v398, %v394
        %v400 = vmul.f32 1.0, %v399
        %v401 = vrcp.pop %v379
        %v402 = vmul.f32 %v379, %v401
        %v403 = vsub.f32 1.0, %v402
        %v404 = vmul.f32 %v401, %v403
        %v405 = vadd.f32 %v401, %v404
        %vm406 = vweird.f32 %v379
        %vm407 = vweird.f32 %v401
        %vm408 = vmor %vm406, %vm407
        %v409 = vsel %vm408, %v401, %v405
        %v410 = vand.u32 2147483647, %v379
        %vm411 = vcmp.eq.f32.partialorder %v410, 8.507059e+37
        %v412 = vand.u32 %v379, 2147483648
        %v413 = vor.u32 1.1754944e-38, %v412
        %v414 = vsel %vm411, %v413, %v409
        %v415 = vmul.f32 1.0, %v414
        %v416 = vrcp.pop %v380
        %v417 = vmul.f32 %v380, %v416
        %v418 = vsub.f32 1.0, %v417
        %v419 = vmul.f32 %v416, %v418
        %v420 = vadd.f32 %v416, %v419
        %vm421 = vweird.f32 %v380
        %vm422 = vweird.f32 %v416
        %vm423 = vmor %vm421, %vm422
        %v424 = vsel %vm423, %v416, %v420
        %v425 = vand.u32 2147483647, %v380
        %vm426 = vcmp.eq.f32.partialorder %v425, 8.507059e+37
        %v427 = vand.u32 %v380, 2147483648
        %v428 = vor.u32 1.1754944e-38, %v427
        %v429 = vsel %vm426, %v428, %v424
        %v430 = vmul.f32 1.0, %v429
        %v431 = vrcp.pop %v381
        %v432 = vmul.f32 %v381, %v431
        %v433 = vsub.f32 1.0, %v432
        %v434 = vmul.f32 %v431, %v433
        %v435 = vadd.f32 %v431, %v434
        %vm436 = vweird.f32 %v381
        %vm437 = vweird.f32 %v431
        %vm438 = vmor %vm436, %vm437
        %v439 = vsel %vm438, %v431, %v435
        %v440 = vand.u32 2147483647, %v381
        %vm441 = vcmp.eq.f32.partialorder %v440, 8.507059e+37
        %v442 = vand.u32 %v381, 2147483648
        %v443 = vor.u32 1.1754944e-38, %v442
        %v444 = vsel %vm441, %v443, %v439
        %v445 = vmul.f32 1.0, %v444
        %v446 = vrcp.pop %v382
        %v447 = vmul.f32 %v382, %v446
        %v448 = vsub.f32 1.0, %v447
        %v449 = vmul.f32 %v446, %v448
        %v450 = vadd.f32 %v446, %v449
        %vm451 = vweird.f32 %v382
        %vm452 = vweird.f32 %v446
        %vm453 = vmor %vm451, %vm452
        %v454 = vsel %vm453, %v446, %v450
        %v455 = vand.u32 2147483647, %v382
        %vm456 = vcmp.eq.f32.partialorder %v455, 8.507059e+37
        %v457 = vand.u32 %v382, 2147483648
        %v458 = vor.u32 1.1754944e-38, %v457
        %v459 = vsel %vm456, %v458, %v454
        %v460 = vmul.f32 1.0, %v459
        %v461 = vrcp.pop %v383
        %v462 = vmul.f32 %v383, %v461
        %v463 = vsub.f32 1.0, %v462
        %v464 = vmul.f32 %v461, %v463
        %v465 = vadd.f32 %v461, %v464
        %vm466 = vweird.f32 %v383
        %vm467 = vweird.f32 %v461
        %vm468 = vmor %vm466, %vm467
        %v469 = vsel %vm468, %v461, %v465
        %v470 = vand.u32 2147483647, %v383
        %vm471 = vcmp.eq.f32.partialorder %v470, 8.507059e+37
        %v472 = vand.u32 %v383, 2147483648
        %v473 = vor.u32 1.1754944e-38, %v472
        %v474 = vsel %vm471, %v473, %v469
        %v475 = vmul.f32 1.0, %v474
        %v476 = vrcp.pop %v384
        %v477 = vmul.f32 %v384, %v476
        %v478 = vsub.f32 1.0, %v477
        %v479 = vmul.f32 %v476, %v478
        %v480 = vadd.f32 %v476, %v479
        %vm481 = vweird.f32 %v384
        %vm482 = vweird.f32 %v476
        %vm483 = vmor %vm481, %vm482
        %v484 = vsel %vm483, %v476, %v480
        %v485 = vand.u32 2147483647, %v384
        %vm486 = vcmp.eq.f32.partialorder %v485, 8.507059e+37
        %v487 = vand.u32 %v384, 2147483648
        %v488 = vor.u32 1.1754944e-38, %v487
        %v489 = vsel %vm486, %v488, %v484
        %v490 = vmul.f32 1.0, %v489
        %v491 = vrcp.pop %v385
        %v492 = vmul.f32 %v385, %v491
        %v493 = vsub.f32 1.0, %v492
        %v494 = vmul.f32 %v491, %v493
        %v495 = vadd.f32 %v491, %v494
        %vm496 = vweird.f32 %v385
        %vm497 = vweird.f32 %v491
        %vm498 = vmor %vm496, %vm497
        %v499 = vsel %vm498, %v491, %v495
        %v500 = vand.u32 2147483647, %v385
        %vm501 = vcmp.eq.f32.partialorder %v500, 8.507059e+37
        %v502 = vand.u32 %v385, 2147483648
        %v503 = vor.u32 1.1754944e-38, %v502
        %v504 = vsel %vm501, %v503, %v499
        %v505 = vmul.f32 1.0, %v504
        %v506 = vmul.f32 %v314, %v400
        %v507 = vmul.f32 %v343, %v415
        %v508 = vmul.f32 %v317, %v430
        %v509 = vmul.f32 %v346, %v445
        %v510 = vmul.f32 %v320, %v460
        %v511 = vmul.f32 %v349, %v475
        %v512 = vmul.f32 %v323, %v490
        %v513 = vmul.f32 %v352, %v505
        %v514 = vld [vmem:[%s3] sm:$0xff]
        %v515 = vld [vmem:[%s4] sm:$0xff]
        %517 = vset.pattern.permute.xlu0 0
        %518 = vperm.xlu0 %517, %v515
        %v519 = vpop.permute.xlu0 %518
        %v522 = vsel %vm283, %v514, 0
        %524 = vmatpush.msra.mxu0 0.0
        %525 = vmatpush.msra.mxu0 0.0
        %526 = vmatpush.msra.mxu0 0.0
        %527 = vmatpush.msra.mxu0 0.0
        %528 = vmatpush.msra.mxu0 0.0
        %529 = vmatpush.msra.mxu0 0.0
        %530 = vmatpush.msra.mxu0 0.0
        %531 = vmatpush.msra.mxu0 0.0
        %532 = vmatpush.msra.mxu0 0.0
        %533 = vmatpush.msra.mxu0 0.0
        %534 = vmatpush.msra.mxu0 0.0
        %535 = vmatpush.msra.mxu0 0.0
        %536 = vmatpush.msra.mxu0 %v512
        %537 = vmatpush.msra.mxu0 %v510
        %538 = vmatpush.msra.mxu0 %v508
        %539 = vmatpush.msra.mxu0 %v506
        %540 = vmatmul.f32.gmra.mxu0 %v522
        %v541 = vpop.f32.mrf.mxu0
        %v542 = vadd.f32 %v519, %v541
        %543 = vdwg.mxu0
        %544 = vmatpush.msra.mxu0 0.0
        %545 = vmatpush.msra.mxu0 0.0
        %546 = vmatpush.msra.mxu0 0.0
        %547 = vmatpush.msra.mxu0 0.0
        %548 = vmatpush.msra.mxu0 0.0
        %549 = vmatpush.msra.mxu0 0.0
        %550 = vmatpush.msra.mxu0 0.0
        %551 = vmatpush.msra.mxu0 0.0
        %552 = vmatpush.msra.mxu0 0.0
        %553 = vmatpush.msra.mxu0 0.0
        %554 = vmatpush.msra.mxu0 0.0
        %555 = vmatpush.msra.mxu0 0.0
        %556 = vmatpush.msra.mxu0 %v513
        %557 = vmatpush.msra.mxu0 %v511
        %558 = vmatpush.msra.mxu0 %v509
        %559 = vmatpush.msra.mxu0 %v507
        %560 = vmatmul.f32.gmra.mxu0 %v522
        %v561 = vpop.f32.mrf.mxu0
        %v562 = vadd.f32 %v519, %v561
        %563 = vdwg.mxu0
        %564 = vst [vmem:[%s244] sm:$0xff] %v542
        %565 = vst [vmem:[%s244 + $0x8] sm:$0xff] %v562
        %s566 = sand.u32 %s140, 1
        %s567 = scalar_lea.sflag [#allocation4], %s566
        %s568 = sand.u32 %s140, 1
        %s569 = smul.addr %s568, 16
        %s570 = scalar_lea.vmem [#allocation5], %s569
        // Predicated region
        $region45: #{tpu_custom_call.1} parent=39 // pred_check
          %p571 = pneg %p150
        $region46: #{tpu_custom_call.1} parent=39 // pred_check_branch
          %573 = sbr.rel (%p571) target = $region48
        $region47: #{tpu_custom_call.1} parent=39 // pred_region
          %s574 = smul.u32 2, %s22
          %576 = vsyncadd %s567, 0
          %s577 = smul.addr %s574, 8
          %s578 = scalar_lea.hbm %s5, %s577
          %s580 = sshll.u32 %s570, 4
          %s581 = int_to_ptr.vmem [resolvable:$true] %s580
          %s582 = sshll.u32 %s578, 4
          %s583 = int_to_ptr.hbm [resolvable:$true] %s582
          %585 = dma.vmem_to_hbm [thread:$0]  %s581, 256, %s583, %s567
        $region48: #{tpu_custom_call.1} parent=39 // pred_fallthru
          _
      $region40: #{tpu_custom_call.1} parent=5 // pred_fallthru
        _
      %p586 = scmp.le.s32.totalorder 2, %s17
      // Predicated region
      $region49: #{tpu_custom_call.1} parent=5 // pred_check
        %p587 = pneg %p586
      $region50: #{tpu_custom_call.1} parent=5 // pred_check_branch
        %589 = sbr.rel (%p587) target = $region52
      $region51: #{tpu_custom_call.1} parent=5 // pred_region
        %s590 = ssub.s32 %s17, 2
        // Predicated region
        $region53: #{tpu_custom_call.1} parent=51 // pred_check
          %p591 = pneg %p156
        $region54: #{tpu_custom_call.1} parent=51 // pred_check_branch
          %593 = sbr.rel (%p591) target = $region56
        $region55: #{tpu_custom_call.1} parent=51 // pred_region
          %s594 = sand.u32 %s141, 1
          %s595 = scalar_lea.sflag [#allocation4], %s594
          %s596 = sand.u32 %s141, 1
          %s597 = smul.addr %s596, 16
          %s598 = scalar_lea.vmem [#allocation5], %s597
          %600 = dma.done %s595, 256
        $region56: #{tpu_custom_call.1} parent=51 // pred_fallthru
          _
      $region52: #{tpu_custom_call.1} parent=5 // pred_fallthru
        _
    $region6: #{tpu_custom_call.1} parent=1 // loop_footer
      %s21 = sadd.s32 1, %s17
    $region7: #{tpu_custom_call.1} parent=1 // loop_footer_branch
      %16 = sbr.rel target = $region3
    $region8: #{tpu_custom_call.1} parent=1 // loop_exit
      _
    %601 = vsyncpa [#allocation3], 1
    %s602 = scalar_lea.sflag [#allocation3], 1
    %603 = vsyncpa %s602, 1
    %604 = vsyncpa [#allocation4], 1
    %s605 = scalar_lea.sflag [#allocation4], 1
    %606 = vsyncpa %s605, 1

</llo_original>
